<compile_context>
chip_gen: v5e
topology: v5e:2x2
jax: 0.10.0
libtpu: 0.0.40
codegen_flags: <defaults>
</compile_context>

<pallas_src>
import functools

import jax
import jax.numpy as jnp
from jax import lax
from jax.experimental import pallas as pl
from jax.experimental.pallas import tpu as pltpu


def _bilstm_fused_kernel(x_ref, wih_ref, whh_ref, b_ref, out_ref, xw_ref,
                         *, seq_len, batch, hidden_dim):
    """Fused bidirectional LSTM recurrence; everything resident in VMEM.

    x_ref   : (S*B, D)   rows grouped per timestep (B consecutive rows per t)
    wih_ref : (D, 8H)    packed input->gate weights, fwd/bwd interleaved per gate
    whh_ref : (2H, 8H)   block-diagonal recurrent weights (fwd block + bwd block)
    b_ref   : (1, 8H)    folded b_ih + b_hh per direction/gate
    out_ref : (B, 2H)    [h_fwd_final | h_bwd_final]
    xw_ref  : (S*B, 8H)  VMEM scratch holding the precomputed input projection
    """
    S, B, H = seq_len, batch, hidden_dim
    H2, G = 2 * H, 8 * H

    # ---- (1) One big MXU matmul: input projection for all timesteps & both
    #          directions; bias broadcast/folded once, not per recurrence step.
    xw_ref[...] = (
        jnp.dot(x_ref[...], wih_ref[...], preferred_element_type=jnp.float32)
        + b_ref[...]
    )

    whh = whh_ref[...]  # (2H, 8H) block-diagonal recurrent weights

    # Column mask: True for columns belonging to the forward direction
    # (each gate owns a 2H-wide block: first H cols = fwd, last H cols = bwd).
    col = lax.broadcasted_iota(jnp.int32, (1, G), 1)
    fwd_mask = (col % H2) < H

    sublane_aligned = (B % 8 == 0)

    def row(t):
        start = t * B
        if sublane_aligned and not isinstance(t, int):
            # Dynamic offset in the fori_loop path: tell Mosaic it is aligned.
            start = pl.multiple_of(start, 8)
        return pl.ds(start, B)

    def cell(t, h, c):
        # Forward direction consumes x[t]; backward consumes x[S-1-t].
        # The lane-mask select is cheap VPU work with no dependence on h, so it
        # does not extend the serial critical path.
        xf = xw_ref[row(t), :]
        xb = xw_ref[row(S - 1 - t), :]
        x_g = jnp.where(fwd_mask, xf, xb)                      # (B, 8H)
        gates = x_g + jnp.dot(h, whh, preferred_element_type=jnp.float32)
        i_g = jax.nn.sigmoid(gates[:, 0 * H2:1 * H2])
        f_g = jax.nn.sigmoid(gates[:, 1 * H2:2 * H2])
        g_g = jnp.tanh(gates[:, 2 * H2:3 * H2])
        o_g = jax.nn.sigmoid(gates[:, 3 * H2:4 * H2])
        c_new = f_g * c + i_g * g_g
        h_new = o_g * jnp.tanh(c_new)
        return h_new, c_new

    h0 = jnp.zeros((B, H2), jnp.float32)
    c0 = jnp.zeros((B, H2), jnp.float32)

    if S <= 64:
        # Fully unrolled recurrence: concrete indices, static slices,
        # full scheduler visibility across steps and directions.
        h, c = h0, c0
        for t in range(S):
            h, c = cell(t, h, c)
    else:
        def body(t, carry):
            return cell(t, *carry)
        # Static bounds -> scan path; unroll=2 amortises loop overhead and lets
        # step t+1's loads/select overlap step t's matmul/EUP work.
        h, c = lax.fori_loop(0, S, body, (h0, c0), unroll=2)

    # State layout [h_fwd | h_bwd] already equals torch's
    # h.permute(1, 0, 2).reshape(B, -1); write it directly (no concat).
    out_ref[...] = h


def history_processor_forward(history, params):
    """history: (seq_len, batch, input_dim) f32. Returns (batch, 2*hidden)."""
    S, B, D = history.shape
    H = params["whh_comb"].shape[0] // 2

    x2d = history.reshape(S * B, D)  # host-side reshape (free in XLA)

    kernel = functools.partial(
        _bilstm_fused_kernel, seq_len=S, batch=B, hidden_dim=H)
    vmem = pl.BlockSpec(memory_space=pltpu.MemorySpace.VMEM)

    # Size the scoped-VMEM limit from the resident footprint so long sequences /
    # large batches do not hit the default limit (no double-buffering here:
    # every operand is fully resident).
    f32 = 4
    resident = (S * B * (D + 8 * H)              # x2d + xw scratch
                + D * 8 * H + 2 * H * 8 * H      # wih + whh
                + 8 * H + B * 2 * H) * f32       # bias + output
    vmem_limit = max(32 << 20, min(int(resident * 1.25) + (4 << 20), 128 << 20))

    return pl.pallas_call(
        kernel,
        out_shape=jax.ShapeDtypeStruct((B, 2 * H), jnp.float32),
        in_specs=[vmem, vmem, vmem, vmem],
        out_specs=vmem,
        scratch_shapes=[pltpu.VMEM((S * B, 8 * H), jnp.float32)],
        compiler_params=pltpu.CompilerParams(vmem_limit_bytes=vmem_limit),
    )(x2d, params["wih_comb"], params["whh_comb"], params["b_comb"])


# ----------------------------------------------------------------------------
# Parameter construction (PyTorch-style raw weights -> packed kernel operands)
# ----------------------------------------------------------------------------
def init_raw_params(key, input_dim, hidden_dim):
    """nn.LSTM-style uniform(-1/sqrt(H), 1/sqrt(H)); gate row order [i,f,g,o]."""
    bound = 1.0 / float(hidden_dim) ** 0.5
    keys = jax.random.split(key, 8)

    def u(k, shape):
        return jax.random.uniform(k, shape, jnp.float32, -bound, bound)

    raw = {}
    for idx, d in enumerate(("f", "b")):
        o = idx * 4
        raw[f"w_ih_{d}"] = u(keys[o + 0], (4 * hidden_dim, input_dim))
        raw[f"w_hh_{d}"] = u(keys[o + 1], (4 * hidden_dim, hidden_dim))
        raw[f"b_ih_{d}"] = u(keys[o + 2], (4 * hidden_dim,))
        raw[f"b_hh_{d}"] = u(keys[o + 3], (4 * hidden_dim,))
    return raw


def pack_params(raw, input_dim, hidden_dim):
    """Repack raw per-direction weights into the fused gate-major layout."""
    H = hidden_dim
    wih = jnp.zeros((input_dim, 8 * H), jnp.float32)
    whh = jnp.zeros((2 * H, 8 * H), jnp.float32)
    bias = jnp.zeros((1, 8 * H), jnp.float32)
    b_f = raw["b_ih_f"] + raw["b_hh_f"]
    b_b = raw["b_ih_b"] + raw["b_hh_b"]
    for g in range(4):
        rows = slice(g * H, (g + 1) * H)
        colf = slice(g * 2 * H, g * 2 * H + H)
        colb = slice(g * 2 * H + H, (g + 1) * 2 * H)
        wih = wih.at[:, colf].set(raw["w_ih_f"][rows, :].T)
        wih = wih.at[:, colb].set(raw["w_ih_b"][rows, :].T)
        whh = whh.at[:H, colf].set(raw["w_hh_f"][rows, :].T)   # fwd block
        whh = whh.at[H:, colb].set(raw["w_hh_b"][rows, :].T)   # bwd block
        bias = bias.at[:, colf].set(b_f[rows][None, :])
        bias = bias.at[:, colb].set(b_b[rows][None, :])
    return {"wih_comb": wih, "whh_comb": whh, "b_comb": bias}


# ----------------------------------------------------------------------------
# Pure-JAX reference (uses the RAW weights -> also validates the repacking)
# ----------------------------------------------------------------------------
def _reference_forward(history, raw):
    S, B, _ = history.shape
    H = raw["w_hh_f"].shape[1]

    def run(d):
        wih = raw[f"w_ih_{d}"].T
        whh = raw[f"w_hh_{d}"].T
        b = (raw[f"b_ih_{d}"] + raw[f"b_hh_{d}"])[None, :]
        xs = history if d == "f" else history[::-1]

        def step(carry, x_t):
            h, c = carry
            gates = x_t @ wih + h @ whh + b
            i_g = jax.nn.sigmoid(gates[:, 0 * H:1 * H])
            f_g = jax.nn.sigmoid(gates[:, 1 * H:2 * H])
            g_g = jnp.tanh(gates[:, 2 * H:3 * H])
            o_g = jax.nn.sigmoid(gates[:, 3 * H:4 * H])
            c_new = f_g * c + i_g * g_g
            h_new = o_g * jnp.tanh(c_new)
            return (h_new, c_new), None

        (h_fin, _), _ = lax.scan(
            step, (jnp.zeros((B, H)), jnp.zeros((B, H))), xs)
        return h_fin

    return jnp.concatenate([run("f"), run("b")], axis=-1)


if __name__ == "__main__":
    seq_len, batch, input_dim, hidden_dim = 8, 2, 16, 32

    key = jax.random.PRNGKey(0)
    k_x, k_p = jax.random.split(key)
    history = jax.random.normal(k_x, (seq_len, batch, input_dim), jnp.float32)

    raw = init_raw_params(k_p, input_dim, hidden_dim)
    params = pack_params(raw, input_dim, hidden_dim)

    out = history_processor_forward(history, params)
    out = jax.block_until_ready(out)

    ref = _reference_forward(history, raw)
    assert out.shape == (batch, 2 * hidden_dim)
    assert jnp.allclose(out, ref, atol=1e-5, rtol=1e-5), \
        "Pallas output mismatch vs reference"

    print("KERNEL_OK")
</pallas_src>

<mosaic_0001>
module attributes {stable_mosaic.version = 11 : i64} {
  func.func @_bilstm_fused_kernel(%arg0: memref<16x16xf32, #tpu.memory_space<vmem>>, %arg1: memref<16x256xf32, #tpu.memory_space<vmem>>, %arg2: memref<64x256xf32, #tpu.memory_space<vmem>>, %arg3: memref<1x256xf32, #tpu.memory_space<vmem>>, %arg4: memref<2x64xf32, #tpu.memory_space<vmem>>, %arg5: memref<16x256xf32, #tpu.memory_space<vmem>>) attributes {dimension_semantics = [], scalar_prefetch = 0 : i64, scratch_operands = 1 : i64, tpu.core_type = #tpu.core_type<tc>} {
    %c0 = arith.constant 0 : index
    %c0_0 = arith.constant 0 : index
    %0 = vector.load %arg0[%c0, %c0_0] : memref<16x16xf32, #tpu.memory_space<vmem>>, vector<16x16xf32>
    %c0_1 = arith.constant 0 : index
    %c0_2 = arith.constant 0 : index
    %1 = vector.load %arg1[%c0_1, %c0_2] : memref<16x256xf32, #tpu.memory_space<vmem>>, vector<16x256xf32>
    %cst = arith.constant dense<0.000000e+00> : vector<16x256xf32>
    %2 = tpu.matmul %0, %1, %cst {dimension_numbers = #tpu.dot_dimension_numbers<[1], [0], [0], [1], [0, 0, 1, 1], [], []>} : vector<16x16xf32>, vector<16x256xf32>, vector<16x256xf32> -> vector<16x256xf32>
    %c0_3 = arith.constant 0 : index
    %c0_4 = arith.constant 0 : index
    %3 = vector.load %arg3[%c0_3, %c0_4] : memref<1x256xf32, #tpu.memory_space<vmem>>, vector<1x256xf32>
    %4 = vector.broadcast %3 : vector<1x256xf32> to vector<16x256xf32>
    %5 = arith.addf %2, %4 : vector<16x256xf32>
    %c0_5 = arith.constant 0 : index
    %c0_6 = arith.constant 0 : index
    %6 = vector.load %arg5[%c0_5, %c0_6] : memref<16x256xf32, #tpu.memory_space<vmem>>, vector<16x256xf32>
    tpu.vector_store %arg5[%c0_5, %c0_6], %5 {strides = array<i32>} : memref<16x256xf32, #tpu.memory_space<vmem>>, vector<16x256xf32>,
    %c0_7 = arith.constant 0 : index
    %c0_8 = arith.constant 0 : index
    %7 = vector.load %arg2[%c0_7, %c0_8] : memref<64x256xf32, #tpu.memory_space<vmem>>, vector<64x256xf32>
    %8 = tpu.iota {dimensions = array<i32: 1>} : vector<1x256xi32>
    %c64_i32 = arith.constant 64 : i32
    %c0_i32 = arith.constant 0 : i32
    %9 = arith.cmpi eq, %c64_i32, %c0_i32 : i32
    %c1_i32 = arith.constant 1 : i32
    %10 = arith.select %9, %c1_i32, %c64_i32 : i32
    %11 = vector.broadcast %10 : i32 to vector<1x256xi32>
    %12 = arith.remsi %8, %11 : vector<1x256xi32>
    %c0_i32_9 = arith.constant 0 : i32
    %13 = vector.broadcast %c0_i32_9 : i32 to vector<1x256xi32>
    %14 = arith.cmpi ne, %12, %13 : vector<1x256xi32>
    %c0_i32_10 = arith.constant 0 : i32
    %15 = vector.broadcast %c0_i32_10 : i32 to vector<1x256xi32>
    %16 = arith.cmpi slt, %12, %15 : vector<1x256xi32>
    %c0_i32_11 = arith.constant 0 : i32
    %17 = arith.cmpi slt, %10, %c0_i32_11 : i32
    %18 = vector.broadcast %17 : i1 to vector<1x256xi1>
    %19 = vector.broadcast %18 : vector<1x256xi1> to vector<1x256xi1>
    %20 = arith.xori %16, %19 : vector<1x256xi1>
    %21 = arith.andi %20, %14 : vector<1x256xi1>
    %22 = vector.broadcast %10 : i32 to vector<1x256xi32>
    %23 = arith.addi %12, %22 : vector<1x256xi32>
    %24 = arith.select %21, %23, %12 : vector<1x256xi1>, vector<1x256xi32>
    %c32_i32 = arith.constant 32 : i32
    %25 = vector.broadcast %c32_i32 : i32 to vector<1x256xi32>
    %26 = arith.cmpi slt, %24, %25 : vector<1x256xi32>
    %cst_12 = arith.constant 0.000000e+00 : f32
    %27 = vector.broadcast %cst_12 : f32 to vector<2x64xf32>
    %cst_13 = arith.constant 0.000000e+00 : f32
    %28 = vector.broadcast %cst_13 : f32 to vector<2x64xf32>
    %c0_14 = arith.constant 0 : index
    %c0_15 = arith.constant 0 : index
    %29 = vector.load %arg5[%c0_14, %c0_15] : memref<16x256xf32, #tpu.memory_space<vmem>>, vector<2x256xf32>
    %c14 = arith.constant 14 : index
    %c0_16 = arith.constant 0 : index
    %30 = vector.load %arg5[%c14, %c0_16] : memref<16x256xf32, #tpu.memory_space<vmem>>, vector<2x256xf32>
    %31 = vector.shape_cast %26 : vector<1x256xi1> to vector<1x256xi1>
    %32 = vector.broadcast %31 : vector<1x256xi1> to vector<2x256xi1>
    %33 = arith.select %32, %29, %30 : vector<2x256xi1>, vector<2x256xf32>
    %cst_17 = arith.constant dense<0.000000e+00> : vector<2x256xf32>
    %34 = tpu.matmul %27, %7, %cst_17 {dimension_numbers = #tpu.dot_dimension_numbers<[1], [0], [0], [1], [0, 0, 1, 1], [], []>} : vector<2x64xf32>, vector<64x256xf32>, vector<2x256xf32> -> vector<2x256xf32>
    %35 = arith.addf %33, %34 : vector<2x256xf32>
    %36 = vector.extract_strided_slice %35 {offsets = [0, 0], sizes = [2, 64], strides = [1, 1]} : vector<2x256xf32> to vector<2x64xf32>
    %37 = arith.negf %36 : vector<2x64xf32>
    %38 = math.exp %37 : vector<2x64xf32>
    %cst_18 = arith.constant 1.000000e+00 : f32
    %39 = vector.broadcast %cst_18 : f32 to vector<2x64xf32>
    %40 = arith.addf %39, %38 : vector<2x64xf32>
    %41 = arith.divf %39, %40 : vector<2x64xf32>
    %42 = vector.extract_strided_slice %35 {offsets = [0, 64], sizes = [2, 64], strides = [1, 1]} : vector<2x256xf32> to vector<2x64xf32>
    %43 = arith.negf %42 : vector<2x64xf32>
    %44 = math.exp %43 : vector<2x64xf32>
    %cst_19 = arith.constant 1.000000e+00 : f32
    %45 = vector.broadcast %cst_19 : f32 to vector<2x64xf32>
    %46 = arith.addf %45, %44 : vector<2x64xf32>
    %47 = arith.divf %45, %46 : vector<2x64xf32>
    %48 = vector.extract_strided_slice %35 {offsets = [0, 128], sizes = [2, 64], strides = [1, 1]} : vector<2x256xf32> to vector<2x64xf32>
    %49 = math.tanh %48 : vector<2x64xf32>
    %50 = vector.extract_strided_slice %35 {offsets = [0, 192], sizes = [2, 64], strides = [1, 1]} : vector<2x256xf32> to vector<2x64xf32>
    %51 = arith.negf %50 : vector<2x64xf32>
    %52 = math.exp %51 : vector<2x64xf32>
    %cst_20 = arith.constant 1.000000e+00 : f32
    %53 = vector.broadcast %cst_20 : f32 to vector<2x64xf32>
    %54 = arith.addf %53, %52 : vector<2x64xf32>
    %55 = arith.divf %53, %54 : vector<2x64xf32>
    %56 = arith.mulf %47, %28 : vector<2x64xf32>
    %57 = arith.mulf %41, %49 : vector<2x64xf32>
    %58 = arith.addf %56, %57 : vector<2x64xf32>
    %59 = math.tanh %58 : vector<2x64xf32>
    %60 = arith.mulf %55, %59 : vector<2x64xf32>
    %c2 = arith.constant 2 : index
    %c0_21 = arith.constant 0 : index
    %61 = vector.load %arg5[%c2, %c0_21] : memref<16x256xf32, #tpu.memory_space<vmem>>, vector<2x256xf32>
    %c12 = arith.constant 12 : index
    %c0_22 = arith.constant 0 : index
    %62 = vector.load %arg5[%c12, %c0_22] : memref<16x256xf32, #tpu.memory_space<vmem>>, vector<2x256xf32>
    %63 = vector.shape_cast %26 : vector<1x256xi1> to vector<1x256xi1>
    %64 = vector.broadcast %63 : vector<1x256xi1> to vector<2x256xi1>
    %65 = arith.select %64, %61, %62 : vector<2x256xi1>, vector<2x256xf32>
    %cst_23 = arith.constant dense<0.000000e+00> : vector<2x256xf32>
    %66 = tpu.matmul %60, %7, %cst_23 {dimension_numbers = #tpu.dot_dimension_numbers<[1], [0], [0], [1], [0, 0, 1, 1], [], []>} : vector<2x64xf32>, vector<64x256xf32>, vector<2x256xf32> -> vector<2x256xf32>
    %67 = arith.addf %65, %66 : vector<2x256xf32>
    %68 = vector.extract_strided_slice %67 {offsets = [0, 0], sizes = [2, 64], strides = [1, 1]} : vector<2x256xf32> to vector<2x64xf32>
    %69 = arith.negf %68 : vector<2x64xf32>
    %70 = math.exp %69 : vector<2x64xf32>
    %cst_24 = arith.constant 1.000000e+00 : f32
    %71 = vector.broadcast %cst_24 : f32 to vector<2x64xf32>
    %72 = arith.addf %71, %70 : vector<2x64xf32>
    %73 = arith.divf %71, %72 : vector<2x64xf32>
    %74 = vector.extract_strided_slice %67 {offsets = [0, 64], sizes = [2, 64], strides = [1, 1]} : vector<2x256xf32> to vector<2x64xf32>
    %75 = arith.negf %74 : vector<2x64xf32>
    %76 = math.exp %75 : vector<2x64xf32>
    %cst_25 = arith.constant 1.000000e+00 : f32
    %77 = vector.broadcast %cst_25 : f32 to vector<2x64xf32>
    %78 = arith.addf %77, %76 : vector<2x64xf32>
    %79 = arith.divf %77, %78 : vector<2x64xf32>
    %80 = vector.extract_strided_slice %67 {offsets = [0, 128], sizes = [2, 64], strides = [1, 1]} : vector<2x256xf32> to vector<2x64xf32>
    %81 = math.tanh %80 : vector<2x64xf32>
    %82 = vector.extract_strided_slice %67 {offsets = [0, 192], sizes = [2, 64], strides = [1, 1]} : vector<2x256xf32> to vector<2x64xf32>
    %83 = arith.negf %82 : vector<2x64xf32>
    %84 = math.exp %83 : vector<2x64xf32>
    %cst_26 = arith.constant 1.000000e+00 : f32
    %85 = vector.broadcast %cst_26 : f32 to vector<2x64xf32>
    %86 = arith.addf %85, %84 : vector<2x64xf32>
    %87 = arith.divf %85, %86 : vector<2x64xf32>
    %88 = arith.mulf %79, %58 : vector<2x64xf32>
    %89 = arith.mulf %73, %81 : vector<2x64xf32>
    %90 = arith.addf %88, %89 : vector<2x64xf32>
    %91 = math.tanh %90 : vector<2x64xf32>
    %92 = arith.mulf %87, %91 : vector<2x64xf32>
    %c4 = arith.constant 4 : index
    %c0_27 = arith.constant 0 : index
    %93 = vector.load %arg5[%c4, %c0_27] : memref<16x256xf32, #tpu.memory_space<vmem>>, vector<2x256xf32>
    %c10 = arith.constant 10 : index
    %c0_28 = arith.constant 0 : index
    %94 = vector.load %arg5[%c10, %c0_28] : memref<16x256xf32, #tpu.memory_space<vmem>>, vector<2x256xf32>
    %95 = vector.shape_cast %26 : vector<1x256xi1> to vector<1x256xi1>
    %96 = vector.broadcast %95 : vector<1x256xi1> to vector<2x256xi1>
    %97 = arith.select %96, %93, %94 : vector<2x256xi1>, vector<2x256xf32>
    %cst_29 = arith.constant dense<0.000000e+00> : vector<2x256xf32>
    %98 = tpu.matmul %92, %7, %cst_29 {dimension_numbers = #tpu.dot_dimension_numbers<[1], [0], [0], [1], [0, 0, 1, 1], [], []>} : vector<2x64xf32>, vector<64x256xf32>, vector<2x256xf32> -> vector<2x256xf32>
    %99 = arith.addf %97, %98 : vector<2x256xf32>
    %100 = vector.extract_strided_slice %99 {offsets = [0, 0], sizes = [2, 64], strides = [1, 1]} : vector<2x256xf32> to vector<2x64xf32>
    %101 = arith.negf %100 : vector<2x64xf32>
    %102 = math.exp %101 : vector<2x64xf32>
    %cst_30 = arith.constant 1.000000e+00 : f32
    %103 = vector.broadcast %cst_30 : f32 to vector<2x64xf32>
    %104 = arith.addf %103, %102 : vector<2x64xf32>
    %105 = arith.divf %103, %104 : vector<2x64xf32>
    %106 = vector.extract_strided_slice %99 {offsets = [0, 64], sizes = [2, 64], strides = [1, 1]} : vector<2x256xf32> to vector<2x64xf32>
    %107 = arith.negf %106 : vector<2x64xf32>
    %108 = math.exp %107 : vector<2x64xf32>
    %cst_31 = arith.constant 1.000000e+00 : f32
    %109 = vector.broadcast %cst_31 : f32 to vector<2x64xf32>
    %110 = arith.addf %109, %108 : vector<2x64xf32>
    %111 = arith.divf %109, %110 : vector<2x64xf32>
    %112 = vector.extract_strided_slice %99 {offsets = [0, 128], sizes = [2, 64], strides = [1, 1]} : vector<2x256xf32> to vector<2x64xf32>
    %113 = math.tanh %112 : vector<2x64xf32>
    %114 = vector.extract_strided_slice %99 {offsets = [0, 192], sizes = [2, 64], strides = [1, 1]} : vector<2x256xf32> to vector<2x64xf32>
    %115 = arith.negf %114 : vector<2x64xf32>
    %116 = math.exp %115 : vector<2x64xf32>
    %cst_32 = arith.constant 1.000000e+00 : f32
    %117 = vector.broadcast %cst_32 : f32 to vector<2x64xf32>
    %118 = arith.addf %117, %116 : vector<2x64xf32>
    %119 = arith.divf %117, %118 : vector<2x64xf32>
    %120 = arith.mulf %111, %90 : vector<2x64xf32>
    %121 = arith.mulf %105, %113 : vector<2x64xf32>
    %122 = arith.addf %120, %121 : vector<2x64xf32>
    %123 = math.tanh %122 : vector<2x64xf32>
    %124 = arith.mulf %119, %123 : vector<2x64xf32>
    %c6 = arith.constant 6 : index
    %c0_33 = arith.constant 0 : index
    %125 = vector.load %arg5[%c6, %c0_33] : memref<16x256xf32, #tpu.memory_space<vmem>>, vector<2x256xf32>
    %c8 = arith.constant 8 : index
    %c0_34 = arith.constant 0 : index
    %126 = vector.load %arg5[%c8, %c0_34] : memref<16x256xf32, #tpu.memory_space<vmem>>, vector<2x256xf32>
    %127 = vector.shape_cast %26 : vector<1x256xi1> to vector<1x256xi1>
    %128 = vector.broadcast %127 : vector<1x256xi1> to vector<2x256xi1>
    %129 = arith.select %128, %125, %126 : vector<2x256xi1>, vector<2x256xf32>
    %cst_35 = arith.constant dense<0.000000e+00> : vector<2x256xf32>
    %130 = tpu.matmul %124, %7, %cst_35 {dimension_numbers = #tpu.dot_dimension_numbers<[1], [0], [0], [1], [0, 0, 1, 1], [], []>} : vector<2x64xf32>, vector<64x256xf32>, vector<2x256xf32> -> vector<2x256xf32>
    %131 = arith.addf %129, %130 : vector<2x256xf32>
    %132 = vector.extract_strided_slice %131 {offsets = [0, 0], sizes = [2, 64], strides = [1, 1]} : vector<2x256xf32> to vector<2x64xf32>
    %133 = arith.negf %132 : vector<2x64xf32>
    %134 = math.exp %133 : vector<2x64xf32>
    %cst_36 = arith.constant 1.000000e+00 : f32
    %135 = vector.broadcast %cst_36 : f32 to vector<2x64xf32>
    %136 = arith.addf %135, %134 : vector<2x64xf32>
    %137 = arith.divf %135, %136 : vector<2x64xf32>
    %138 = vector.extract_strided_slice %131 {offsets = [0, 64], sizes = [2, 64], strides = [1, 1]} : vector<2x256xf32> to vector<2x64xf32>
    %139 = arith.negf %138 : vector<2x64xf32>
    %140 = math.exp %139 : vector<2x64xf32>
    %cst_37 = arith.constant 1.000000e+00 : f32
    %141 = vector.broadcast %cst_37 : f32 to vector<2x64xf32>
    %142 = arith.addf %141, %140 : vector<2x64xf32>
    %143 = arith.divf %141, %142 : vector<2x64xf32>
    %144 = vector.extract_strided_slice %131 {offsets = [0, 128], sizes = [2, 64], strides = [1, 1]} : vector<2x256xf32> to vector<2x64xf32>
    %145 = math.tanh %144 : vector<2x64xf32>
    %146 = vector.extract_strided_slice %131 {offsets = [0, 192], sizes = [2, 64], strides = [1, 1]} : vector<2x256xf32> to vector<2x64xf32>
    %147 = arith.negf %146 : vector<2x64xf32>
    %148 = math.exp %147 : vector<2x64xf32>
    %cst_38 = arith.constant 1.000000e+00 : f32
    %149 = vector.broadcast %cst_38 : f32 to vector<2x64xf32>
    %150 = arith.addf %149, %148 : vector<2x64xf32>
    %151 = arith.divf %149, %150 : vector<2x64xf32>
    %152 = arith.mulf %143, %122 : vector<2x64xf32>
    %153 = arith.mulf %137, %145 : vector<2x64xf32>
    %154 = arith.addf %152, %153 : vector<2x64xf32>
    %155 = math.tanh %154 : vector<2x64xf32>
    %156 = arith.mulf %151, %155 : vector<2x64xf32>
    %c8_39 = arith.constant 8 : index
    %c0_40 = arith.constant 0 : index
    %157 = vector.load %arg5[%c8_39, %c0_40] : memref<16x256xf32, #tpu.memory_space<vmem>>, vector<2x256xf32>
    %c6_41 = arith.constant 6 : index
    %c0_42 = arith.constant 0 : index
    %158 = vector.load %arg5[%c6_41, %c0_42] : memref<16x256xf32, #tpu.memory_space<vmem>>, vector<2x256xf32>
    %159 = vector.shape_cast %26 : vector<1x256xi1> to vector<1x256xi1>
    %160 = vector.broadcast %159 : vector<1x256xi1> to vector<2x256xi1>
    %161 = arith.select %160, %157, %158 : vector<2x256xi1>, vector<2x256xf32>
    %cst_43 = arith.constant dense<0.000000e+00> : vector<2x256xf32>
    %162 = tpu.matmul %156, %7, %cst_43 {dimension_numbers = #tpu.dot_dimension_numbers<[1], [0], [0], [1], [0, 0, 1, 1], [], []>} : vector<2x64xf32>, vector<64x256xf32>, vector<2x256xf32> -> vector<2x256xf32>
    %163 = arith.addf %161, %162 : vector<2x256xf32>
    %164 = vector.extract_strided_slice %163 {offsets = [0, 0], sizes = [2, 64], strides = [1, 1]} : vector<2x256xf32> to vector<2x64xf32>
    %165 = arith.negf %164 : vector<2x64xf32>
    %166 = math.exp %165 : vector<2x64xf32>
    %cst_44 = arith.constant 1.000000e+00 : f32
    %167 = vector.broadcast %cst_44 : f32 to vector<2x64xf32>
    %168 = arith.addf %167, %166 : vector<2x64xf32>
    %169 = arith.divf %167, %168 : vector<2x64xf32>
    %170 = vector.extract_strided_slice %163 {offsets = [0, 64], sizes = [2, 64], strides = [1, 1]} : vector<2x256xf32> to vector<2x64xf32>
    %171 = arith.negf %170 : vector<2x64xf32>
    %172 = math.exp %171 : vector<2x64xf32>
    %cst_45 = arith.constant 1.000000e+00 : f32
    %173 = vector.broadcast %cst_45 : f32 to vector<2x64xf32>
    %174 = arith.addf %173, %172 : vector<2x64xf32>
    %175 = arith.divf %173, %174 : vector<2x64xf32>
    %176 = vector.extract_strided_slice %163 {offsets = [0, 128], sizes = [2, 64], strides = [1, 1]} : vector<2x256xf32> to vector<2x64xf32>
    %177 = math.tanh %176 : vector<2x64xf32>
    %178 = vector.extract_strided_slice %163 {offsets = [0, 192], sizes = [2, 64], strides = [1, 1]} : vector<2x256xf32> to vector<2x64xf32>
    %179 = arith.negf %178 : vector<2x64xf32>
    %180 = math.exp %179 : vector<2x64xf32>
    %cst_46 = arith.constant 1.000000e+00 : f32
    %181 = vector.broadcast %cst_46 : f32 to vector<2x64xf32>
    %182 = arith.addf %181, %180 : vector<2x64xf32>
    %183 = arith.divf %181, %182 : vector<2x64xf32>
    %184 = arith.mulf %175, %154 : vector<2x64xf32>
    %185 = arith.mulf %169, %177 : vector<2x64xf32>
    %186 = arith.addf %184, %185 : vector<2x64xf32>
    %187 = math.tanh %186 : vector<2x64xf32>
    %188 = arith.mulf %183, %187 : vector<2x64xf32>
    %c10_47 = arith.constant 10 : index
    %c0_48 = arith.constant 0 : index
    %189 = vector.load %arg5[%c10_47, %c0_48] : memref<16x256xf32, #tpu.memory_space<vmem>>, vector<2x256xf32>
    %c4_49 = arith.constant 4 : index
    %c0_50 = arith.constant 0 : index
    %190 = vector.load %arg5[%c4_49, %c0_50] : memref<16x256xf32, #tpu.memory_space<vmem>>, vector<2x256xf32>
    %191 = vector.shape_cast %26 : vector<1x256xi1> to vector<1x256xi1>
    %192 = vector.broadcast %191 : vector<1x256xi1> to vector<2x256xi1>
    %193 = arith.select %192, %189, %190 : vector<2x256xi1>, vector<2x256xf32>
    %cst_51 = arith.constant dense<0.000000e+00> : vector<2x256xf32>
    %194 = tpu.matmul %188, %7, %cst_51 {dimension_numbers = #tpu.dot_dimension_numbers<[1], [0], [0], [1], [0, 0, 1, 1], [], []>} : vector<2x64xf32>, vector<64x256xf32>, vector<2x256xf32> -> vector<2x256xf32>
    %195 = arith.addf %193, %194 : vector<2x256xf32>
    %196 = vector.extract_strided_slice %195 {offsets = [0, 0], sizes = [2, 64], strides = [1, 1]} : vector<2x256xf32> to vector<2x64xf32>
    %197 = arith.negf %196 : vector<2x64xf32>
    %198 = math.exp %197 : vector<2x64xf32>
    %cst_52 = arith.constant 1.000000e+00 : f32
    %199 = vector.broadcast %cst_52 : f32 to vector<2x64xf32>
    %200 = arith.addf %199, %198 : vector<2x64xf32>
    %201 = arith.divf %199, %200 : vector<2x64xf32>
    %202 = vector.extract_strided_slice %195 {offsets = [0, 64], sizes = [2, 64], strides = [1, 1]} : vector<2x256xf32> to vector<2x64xf32>
    %203 = arith.negf %202 : vector<2x64xf32>
    %204 = math.exp %203 : vector<2x64xf32>
    %cst_53 = arith.constant 1.000000e+00 : f32
    %205 = vector.broadcast %cst_53 : f32 to vector<2x64xf32>
    %206 = arith.addf %205, %204 : vector<2x64xf32>
    %207 = arith.divf %205, %206 : vector<2x64xf32>
    %208 = vector.extract_strided_slice %195 {offsets = [0, 128], sizes = [2, 64], strides = [1, 1]} : vector<2x256xf32> to vector<2x64xf32>
    %209 = math.tanh %208 : vector<2x64xf32>
    %210 = vector.extract_strided_slice %195 {offsets = [0, 192], sizes = [2, 64], strides = [1, 1]} : vector<2x256xf32> to vector<2x64xf32>
    %211 = arith.negf %210 : vector<2x64xf32>
    %212 = math.exp %211 : vector<2x64xf32>
    %cst_54 = arith.constant 1.000000e+00 : f32
    %213 = vector.broadcast %cst_54 : f32 to vector<2x64xf32>
    %214 = arith.addf %213, %212 : vector<2x64xf32>
    %215 = arith.divf %213, %214 : vector<2x64xf32>
    %216 = arith.mulf %207, %186 : vector<2x64xf32>
    %217 = arith.mulf %201, %209 : vector<2x64xf32>
    %218 = arith.addf %216, %217 : vector<2x64xf32>
    %219 = math.tanh %218 : vector<2x64xf32>
    %220 = arith.mulf %215, %219 : vector<2x64xf32>
    %c12_55 = arith.constant 12 : index
    %c0_56 = arith.constant 0 : index
    %221 = vector.load %arg5[%c12_55, %c0_56] : memref<16x256xf32, #tpu.memory_space<vmem>>, vector<2x256xf32>
    %c2_57 = arith.constant 2 : index
    %c0_58 = arith.constant 0 : index
    %222 = vector.load %arg5[%c2_57, %c0_58] : memref<16x256xf32, #tpu.memory_space<vmem>>, vector<2x256xf32>
    %223 = vector.shape_cast %26 : vector<1x256xi1> to vector<1x256xi1>
    %224 = vector.broadcast %223 : vector<1x256xi1> to vector<2x256xi1>
    %225 = arith.select %224, %221, %222 : vector<2x256xi1>, vector<2x256xf32>
    %cst_59 = arith.constant dense<0.000000e+00> : vector<2x256xf32>
    %226 = tpu.matmul %220, %7, %cst_59 {dimension_numbers = #tpu.dot_dimension_numbers<[1], [0], [0], [1], [0, 0, 1, 1], [], []>} : vector<2x64xf32>, vector<64x256xf32>, vector<2x256xf32> -> vector<2x256xf32>
    %227 = arith.addf %225, %226 : vector<2x256xf32>
    %228 = vector.extract_strided_slice %227 {offsets = [0, 0], sizes = [2, 64], strides = [1, 1]} : vector<2x256xf32> to vector<2x64xf32>
    %229 = arith.negf %228 : vector<2x64xf32>
    %230 = math.exp %229 : vector<2x64xf32>
    %cst_60 = arith.constant 1.000000e+00 : f32
    %231 = vector.broadcast %cst_60 : f32 to vector<2x64xf32>
    %232 = arith.addf %231, %230 : vector<2x64xf32>
    %233 = arith.divf %231, %232 : vector<2x64xf32>
    %234 = vector.extract_strided_slice %227 {offsets = [0, 64], sizes = [2, 64], strides = [1, 1]} : vector<2x256xf32> to vector<2x64xf32>
    %235 = arith.negf %234 : vector<2x64xf32>
    %236 = math.exp %235 : vector<2x64xf32>
    %cst_61 = arith.constant 1.000000e+00 : f32
    %237 = vector.broadcast %cst_61 : f32 to vector<2x64xf32>
    %238 = arith.addf %237, %236 : vector<2x64xf32>
    %239 = arith.divf %237, %238 : vector<2x64xf32>
    %240 = vector.extract_strided_slice %227 {offsets = [0, 128], sizes = [2, 64], strides = [1, 1]} : vector<2x256xf32> to vector<2x64xf32>
    %241 = math.tanh %240 : vector<2x64xf32>
    %242 = vector.extract_strided_slice %227 {offsets = [0, 192], sizes = [2, 64], strides = [1, 1]} : vector<2x256xf32> to vector<2x64xf32>
    %243 = arith.negf %242 : vector<2x64xf32>
    %244 = math.exp %243 : vector<2x64xf32>
    %cst_62 = arith.constant 1.000000e+00 : f32
    %245 = vector.broadcast %cst_62 : f32 to vector<2x64xf32>
    %246 = arith.addf %245, %244 : vector<2x64xf32>
    %247 = arith.divf %245, %246 : vector<2x64xf32>
    %248 = arith.mulf %239, %218 : vector<2x64xf32>
    %249 = arith.mulf %233, %241 : vector<2x64xf32>
    %250 = arith.addf %248, %249 : vector<2x64xf32>
    %251 = math.tanh %250 : vector<2x64xf32>
    %252 = arith.mulf %247, %251 : vector<2x64xf32>
    %c14_63 = arith.constant 14 : index
    %c0_64 = arith.constant 0 : index
    %253 = vector.load %arg5[%c14_63, %c0_64] : memref<16x256xf32, #tpu.memory_space<vmem>>, vector<2x256xf32>
    %c0_65 = arith.constant 0 : index
    %c0_66 = arith.constant 0 : index
    %254 = vector.load %arg5[%c0_65, %c0_66] : memref<16x256xf32, #tpu.memory_space<vmem>>, vector<2x256xf32>
    %255 = vector.shape_cast %26 : vector<1x256xi1> to vector<1x256xi1>
    %256 = vector.broadcast %255 : vector<1x256xi1> to vector<2x256xi1>
    %257 = arith.select %256, %253, %254 : vector<2x256xi1>, vector<2x256xf32>
    %cst_67 = arith.constant dense<0.000000e+00> : vector<2x256xf32>
    %258 = tpu.matmul %252, %7, %cst_67 {dimension_numbers = #tpu.dot_dimension_numbers<[1], [0], [0], [1], [0, 0, 1, 1], [], []>} : vector<2x64xf32>, vector<64x256xf32>, vector<2x256xf32> -> vector<2x256xf32>
    %259 = arith.addf %257, %258 : vector<2x256xf32>
    %260 = vector.extract_strided_slice %259 {offsets = [0, 0], sizes = [2, 64], strides = [1, 1]} : vector<2x256xf32> to vector<2x64xf32>
    %261 = arith.negf %260 : vector<2x64xf32>
    %262 = math.exp %261 : vector<2x64xf32>
    %cst_68 = arith.constant 1.000000e+00 : f32
    %263 = vector.broadcast %cst_68 : f32 to vector<2x64xf32>
    %264 = arith.addf %263, %262 : vector<2x64xf32>
    %265 = arith.divf %263, %264 : vector<2x64xf32>
    %266 = vector.extract_strided_slice %259 {offsets = [0, 64], sizes = [2, 64], strides = [1, 1]} : vector<2x256xf32> to vector<2x64xf32>
    %267 = arith.negf %266 : vector<2x64xf32>
    %268 = math.exp %267 : vector<2x64xf32>
    %cst_69 = arith.constant 1.000000e+00 : f32
    %269 = vector.broadcast %cst_69 : f32 to vector<2x64xf32>
    %270 = arith.addf %269, %268 : vector<2x64xf32>
    %271 = arith.divf %269, %270 : vector<2x64xf32>
    %272 = vector.extract_strided_slice %259 {offsets = [0, 128], sizes = [2, 64], strides = [1, 1]} : vector<2x256xf32> to vector<2x64xf32>
    %273 = math.tanh %272 : vector<2x64xf32>
    %274 = vector.extract_strided_slice %259 {offsets = [0, 192], sizes = [2, 64], strides = [1, 1]} : vector<2x256xf32> to vector<2x64xf32>
    %275 = arith.negf %274 : vector<2x64xf32>
    %276 = math.exp %275 : vector<2x64xf32>
    %cst_70 = arith.constant 1.000000e+00 : f32
    %277 = vector.broadcast %cst_70 : f32 to vector<2x64xf32>
    %278 = arith.addf %277, %276 : vector<2x64xf32>
    %279 = arith.divf %277, %278 : vector<2x64xf32>
    %280 = arith.mulf %271, %250 : vector<2x64xf32>
    %281 = arith.mulf %265, %273 : vector<2x64xf32>
    %282 = arith.addf %280, %281 : vector<2x64xf32>
    %283 = math.tanh %282 : vector<2x64xf32>
    %284 = arith.mulf %279, %283 : vector<2x64xf32>
    %c0_71 = arith.constant 0 : index
    %c0_72 = arith.constant 0 : index
    %285 = vector.load %arg4[%c0_71, %c0_72] : memref<2x64xf32, #tpu.memory_space<vmem>>, vector<2x64xf32>
    tpu.vector_store %arg4[%c0_71, %c0_72], %284 {strides = array<i32>} : memref<2x64xf32, #tpu.memory_space<vmem>>, vector<2x64xf32>,
    return
  }
}

</mosaic_0001>

<llo_original>
// kernel: tpu_custom_call.1
$region0: #{tpu_custom_call.1}
  #allocation0 [shape = 'u32[]', space=smem, size = 0x4, offset = 0x4, fixed_abs, tag = 'smem constant byte address 0x4 - core index']
  #allocation1 [shape = 'u32[72,128]{1,0:T(1,128)}', space=vmem, size = 0x9000, scoped, tag = 'internal scratch']
  #allocation2 [shape = 'f32[16,256]{1,0:T(8,128)}', space=vmem, size = 0x4000, scoped, tag = 'scratch operand']
  %s0 = inlined_call_operand.hbm [shape: f32[16,16], index: 0, kind: input, shape index: {}]
  %s1 = inlined_call_operand.hbm [shape: f32[16,256], index: 1, kind: input, shape index: {}]
  %s2 = inlined_call_operand.hbm [shape: f32[64,256], index: 2, kind: input, shape index: {}]
  %s3 = inlined_call_operand.vmem [shape: f32[1,256], index: 3, kind: input, shape index: {}]
  %s4 = inlined_call_operand.hbm [shape: f32[2,64], index: 4, kind: output, shape index: {}]
  %s5 = sld [smem:[#allocation0]]
  $region38: #{tpu_custom_call.1} parent=0
    _
  %s7 = ssub.s32 1, %s5
  %s8 = scalar_select 0, %s7, %s5
  $region1: #{tpu_custom_call.1} parent=0
    #allocation3 [shape = 'u8[8192]{0}', space=vmem, size = 0x2000, scoped, tag = 'input window, operand 0, single buffered']
    #allocation4 [shape = 's32[1]{0}', space=sflag, size = 0x4, scoped, tag = 'scoped memory for tpu_custom_call.1']
    #allocation5 [shape = 's32[1]{0}', space=sflag, size = 0x4, scoped, tag = 'scoped memory for tpu_custom_call.1']
    #allocation6 [shape = 'u8[16384]{0}', space=vmem, size = 0x4000, scoped, tag = 'input window, operand 1, single buffered']
    #allocation7 [shape = 's32[1]{0}', space=sflag, size = 0x4, scoped, tag = 'scoped memory for tpu_custom_call.1']
    #allocation8 [shape = 'u8[65536]{0}', space=vmem, size = 0x10000, scoped, tag = 'input window, operand 2, single buffered']
    #allocation9 [shape = 'u8[1024]{0}', space=vmem, size = 0x400, scoped, tag = 'output window, operand 0, single buffered']
    %9 = vsyncpa [#allocation4], 0
    %10 = vsyncpa [#allocation7], 0
    %11 = vsyncpa [#allocation5], 0
    // Predicated region
    $region2: #{tpu_custom_call.1} parent=1 // pred_check
      _
    $region3: #{tpu_custom_call.1} parent=1 // pred_check_branch
      %13 = sbr.rel (0) target = $region5
    $region4: #{tpu_custom_call.1} parent=1 // pred_region
      %15 = vsyncadd [#allocation4], 0
      %s16 = sshll.u32 %s0, 4
      %s17 = int_to_ptr.hbm [resolvable:$true] %s16
      %s18 = sshll.u32 [#allocation3], 4
      %s19 = int_to_ptr.vmem [resolvable:$true] %s18
      %24 = dma.hbm_to_vmem [thread:$0]  %s17, 256, %s19, [#allocation4], 128, 128, 8
    $region5: #{tpu_custom_call.1} parent=1 // pred_fallthru
      _
    // Predicated region
    $region6: #{tpu_custom_call.1} parent=1 // pred_check
      _
    $region7: #{tpu_custom_call.1} parent=1 // pred_check_branch
      %26 = sbr.rel (0) target = $region9
    $region8: #{tpu_custom_call.1} parent=1 // pred_region
      %28 = vsyncadd [#allocation7], 0
      %s29 = sshll.u32 %s1, 4
      %s30 = int_to_ptr.hbm [resolvable:$true] %s29
      %s31 = sshll.u32 [#allocation6], 4
      %s32 = int_to_ptr.vmem [resolvable:$true] %s31
      %37 = dma.hbm_to_vmem [thread:$0]  %s30, 512, %s32, [#allocation7], 256, 256, 16
    $region9: #{tpu_custom_call.1} parent=1 // pred_fallthru
      _
    // Predicated region
    $region10: #{tpu_custom_call.1} parent=1 // pred_check
      _
    $region11: #{tpu_custom_call.1} parent=1 // pred_check_branch
      %39 = sbr.rel (0) target = $region13
    $region12: #{tpu_custom_call.1} parent=1 // pred_region
      %41 = vsyncadd [#allocation7], 0
      %s42 = sshll.u32 %s2, 4
      %s43 = int_to_ptr.hbm [resolvable:$true] %s42
      %s44 = sshll.u32 [#allocation8], 4
      %s45 = int_to_ptr.vmem [resolvable:$true] %s44
      %50 = dma.hbm_to_vmem [thread:$0]  %s43, 2048, %s45, [#allocation7], 256, 256, 16
    $region13: #{tpu_custom_call.1} parent=1 // pred_fallthru
      _
    // Predicated region
    $region14: #{tpu_custom_call.1} parent=1 // pred_check
      _
    $region15: #{tpu_custom_call.1} parent=1 // pred_check_branch
      %52 = sbr.rel (0) target = $region17
    $region16: #{tpu_custom_call.1} parent=1 // pred_region
      _
    $region17: #{tpu_custom_call.1} parent=1 // pred_fallthru
      _
    // Predicated region
    $region18: #{tpu_custom_call.1} parent=1 // pred_check
      _
    $region19: #{tpu_custom_call.1} parent=1 // pred_check_branch
      %54 = sbr.rel (0) target = $region21
    $region20: #{tpu_custom_call.1} parent=1 // pred_region
      %56 = dma.done [#allocation4], 256
    $region21: #{tpu_custom_call.1} parent=1 // pred_fallthru
      _
    // Predicated region
    $region22: #{tpu_custom_call.1} parent=1 // pred_check
      _
    $region23: #{tpu_custom_call.1} parent=1 // pred_check_branch
      %58 = sbr.rel (0) target = $region25
    $region24: #{tpu_custom_call.1} parent=1 // pred_region
      %60 = dma.done [#allocation7], 512
    $region25: #{tpu_custom_call.1} parent=1 // pred_fallthru
      _
    // Predicated region
    $region26: #{tpu_custom_call.1} parent=1 // pred_check
      _
    $region27: #{tpu_custom_call.1} parent=1 // pred_check_branch
      %62 = sbr.rel (0) target = $region29
    $region28: #{tpu_custom_call.1} parent=1 // pred_region
      %64 = dma.done [#allocation7], 2048
    $region29: #{tpu_custom_call.1} parent=1 // pred_fallthru
      _
    %v65 = vld [vmem:[#allocation3] sm:$0xff]
    %v66 = vld [vmem:[#allocation3 + $0x8] sm:$0xff]
    %v67 = vld [vmem:[#allocation6] sm:$0xff]
    %v68 = vld [vmem:[#allocation6 + $0x8] sm:$0xff]
    %v69 = vld [vmem:[#allocation6 + $0x10] sm:$0xff]
    %v70 = vld [vmem:[#allocation6 + $0x18] sm:$0xff]
    %v71 = vld [vmem:[%s3] sm:$0x3]
    %v73 = vperm.slane %v71, 0
    %v74 = vperm.slane %v71, 1
    %vm77 = vcmask 130048
    %v79 = vsel %vm77, %v65, 0
    %v82 = vsel %vm77, %v66, 0
    %84 = vmatpush.msra.mxu0 0.0
    %85 = vmatpush.msra.mxu0 0.0
    %86 = vmatpush.msra.mxu0 0.0
    %87 = vmatpush.msra.mxu0 0.0
    %88 = vmatpush.msra.mxu0 0.0
    %89 = vmatpush.msra.mxu0 0.0
    %90 = vmatpush.msra.mxu0 0.0
    %91 = vmatpush.msra.mxu0 0.0
    %92 = vmatpush.msra.mxu0 0.0
    %93 = vmatpush.msra.mxu0 0.0
    %94 = vmatpush.msra.mxu0 0.0
    %95 = vmatpush.msra.mxu0 0.0
    %96 = vmatpush.msra.mxu0 0.0
    %97 = vmatpush.msra.mxu0 0.0
    %98 = vmatpush.msra.mxu0 %v69
    %99 = vmatpush.msra.mxu0 %v67
    %100 = vmatmul.f32.gmra.mxu0 %v79
    %v101 = vpop.f32.mrf.mxu0
    %v102 = vadd.f32 %v73, %v101
    %103 = vmatmul.f32.gmra.mxu0 %v82
    %v104 = vpop.f32.mrf.mxu0
    %v105 = vadd.f32 %v73, %v104
    %106 = vdwg.mxu0
    %107 = vmatpush.msra.mxu0 0.0
    %108 = vmatpush.msra.mxu0 0.0
    %109 = vmatpush.msra.mxu0 0.0
    %110 = vmatpush.msra.mxu0 0.0
    %111 = vmatpush.msra.mxu0 0.0
    %112 = vmatpush.msra.mxu0 0.0
    %113 = vmatpush.msra.mxu0 0.0
    %114 = vmatpush.msra.mxu0 0.0
    %115 = vmatpush.msra.mxu0 0.0
    %116 = vmatpush.msra.mxu0 0.0
    %117 = vmatpush.msra.mxu0 0.0
    %118 = vmatpush.msra.mxu0 0.0
    %119 = vmatpush.msra.mxu0 0.0
    %120 = vmatpush.msra.mxu0 0.0
    %121 = vmatpush.msra.mxu0 %v70
    %122 = vmatpush.msra.mxu0 %v68
    %123 = vmatmul.f32.gmra.mxu0 %v79
    %v124 = vpop.f32.mrf.mxu0
    %v125 = vadd.f32 %v74, %v124
    %126 = vmatmul.f32.gmra.mxu0 %v82
    %v127 = vpop.f32.mrf.mxu0
    %v128 = vadd.f32 %v74, %v127
    %129 = vdwg.mxu0
    %130 = vst [vmem:[#allocation2] sm:$0xff] %v102
    %131 = vst [vmem:[#allocation2 + $0x8] sm:$0xff] %v125
    %132 = vst [vmem:[#allocation2 + $0x10] sm:$0xff] %v105
    %133 = vst [vmem:[#allocation2 + $0x18] sm:$0xff] %v128
    %v134 = vld [vmem:[#allocation8] sm:$0xff]
    %v135 = vld [vmem:[#allocation8 + $0x8] sm:$0xff]
    %v136 = vld [vmem:[#allocation8 + $0x10] sm:$0xff]
    %v137 = vld [vmem:[#allocation8 + $0x18] sm:$0xff]
    %v138 = vld [vmem:[#allocation8 + $0x20] sm:$0xff]
    %v139 = vld [vmem:[#allocation8 + $0x28] sm:$0xff]
    %v140 = vld [vmem:[#allocation8 + $0x30] sm:$0xff]
    %v141 = vld [vmem:[#allocation8 + $0x38] sm:$0xff]
    %v142 = vld [vmem:[#allocation8 + $0x40] sm:$0xff]
    %v143 = vld [vmem:[#allocation8 + $0x48] sm:$0xff]
    %v144 = vld [vmem:[#allocation8 + $0x50] sm:$0xff]
    %v145 = vld [vmem:[#allocation8 + $0x58] sm:$0xff]
    %v146 = vld [vmem:[#allocation8 + $0x60] sm:$0xff]
    %v147 = vld [vmem:[#allocation8 + $0x68] sm:$0xff]
    %v148 = vld [vmem:[#allocation8 + $0x70] sm:$0xff]
    %v149 = vld [vmem:[#allocation8 + $0x78] sm:$0xff]
    %v150 = vlaneseq
    %v151 = vand.u32 %v150, 127
    %v152 = vadd.s32 %v151, 128
    %vm153 = vcmp.lt.s32.totalorder %v151, 0
    %v154 = vsub.s32 0, %v151
    %v155 = vsel %vm153, %v154, %v151
    %v156 = vshrl.u32 %v155, 6
    %v157 = vand.u32 %v155, 63
    %v158 = vsub.s32 0, %v157
    %v159 = vsel %vm153, %v158, %v157
    %vm160 = vcmp.lt.s32.totalorder %v152, 0
    %v161 = vsub.s32 0, %v152
    %v162 = vsel %vm160, %v161, %v152
    %v163 = vshrl.u32 %v162, 6
    %v164 = vand.u32 %v162, 63
    %v165 = vsub.s32 0, %v164
    %v166 = vsel %vm160, %v165, %v164
    %vm167 = vcmp.ne.s32.totalorder %v159, 0
    %vm168 = vcmp.ne.s32.totalorder %v166, 0
    %vm169 = vcmp.lt.s32.totalorder %v159, 0
    %vm170 = vcmp.lt.s32.totalorder %v166, 0
    %vm171 = vmand %vm169, %vm167
    %vm172 = vmand %vm170, %vm168
    %v173 = vadd.s32 %v159, 64
    %v174 = vadd.s32 %v166, 64
    %v175 = vsel %vm171, %v173, %v159
    %v176 = vsel %vm172, %v174, %v166
    %vm177 = vcmp.lt.s32.totalorder %v175, 32
    %vm178 = vcmp.lt.s32.totalorder %v176, 32
    %v179 = vld [vmem:[#allocation2] sm:$0x3]
    %v180 = vld [vmem:[#allocation2 + $0x8] sm:$0x3]
    %v181 = vld [vmem:[#allocation2 + $0x10] sm:$0xc0]
    %v182 = vld [vmem:[#allocation2 + $0x18] sm:$0xc0]
    %v183 = vsel %vm177, 1, 0
    %v184 = vsel %vm178, 1, 0
    %vm185 = vcmp.eq.s32.totalorder %v183, 1
    %vm186 = vcmp.eq.s32.totalorder %v184, 1
    %v189 = vrot.slane %v181, 6
    %v190 = vrot.slane %v182, 6
    %v193 = vsel %vm185, %v179, %v189
    %v194 = vsel %vm186, %v180, %v190
    %vm195 = vcmask 523264
    %v197 = vsel %vm195, 0.0, 0
    %199 = vmatpush.msra.mxu0 0.0
    %200 = vmatpush.msra.mxu0 0.0
    %201 = vmatpush.msra.mxu0 0.0
    %202 = vmatpush.msra.mxu0 0.0
    %203 = vmatpush.msra.mxu0 0.0
    %204 = vmatpush.msra.mxu0 0.0
    %205 = vmatpush.msra.mxu0 0.0
    %206 = vmatpush.msra.mxu0 0.0
    %207 = vmatpush.msra.mxu0 %v148
    %208 = vmatpush.msra.mxu0 %v146
    %209 = vmatpush.msra.mxu0 %v144
    %210 = vmatpush.msra.mxu0 %v142
    %211 = vmatpush.msra.mxu0 %v140
    %212 = vmatpush.msra.mxu0 %v138
    %213 = vmatpush.msra.mxu0 %v136
    %214 = vmatpush.msra.mxu0 %v134
    %215 = vmatmul.f32.gmra.mxu0 %v197
    %v216 = vpop.f32.mrf.mxu0
    %v217 = vadd.f32 0.0, %v216
    %218 = vdwg.mxu0
    %219 = vmatpush.msra.mxu0 0.0
    %220 = vmatpush.msra.mxu0 0.0
    %221 = vmatpush.msra.mxu0 0.0
    %222 = vmatpush.msra.mxu0 0.0
    %223 = vmatpush.msra.mxu0 0.0
    %224 = vmatpush.msra.mxu0 0.0
    %225 = vmatpush.msra.mxu0 0.0
    %226 = vmatpush.msra.mxu0 0.0
    %227 = vmatpush.msra.mxu0 %v149
    %228 = vmatpush.msra.mxu0 %v147
    %229 = vmatpush.msra.mxu0 %v145
    %230 = vmatpush.msra.mxu0 %v143
    %231 = vmatpush.msra.mxu0 %v141
    %232 = vmatpush.msra.mxu0 %v139
    %233 = vmatpush.msra.mxu0 %v137
    %234 = vmatpush.msra.mxu0 %v135
    %235 = vmatmul.f32.gmra.mxu0 %v197
    %v236 = vpop.f32.mrf.mxu0
    %v237 = vadd.f32 0.0, %v236
    %238 = vdwg.mxu0
    %v239 = vadd.f32 %v193, %v217
    %v240 = vadd.f32 %v194, %v237
    %v241 = vxor.u32 %v239, 2147483648
    %v242 = vmul.f32 %v241, 1.442695
    %v243 = vpow.pop %v242
    %v244 = vadd.f32 %v243, 1.0
    %v245 = vrcp.pop %v244
    %v246 = vmul.f32 %v244, %v245
    %v247 = vsub.f32 1.0, %v246
    %v248 = vmul.f32 %v245, %v247
    %v249 = vadd.f32 %v245, %v248
    %vm250 = vweird.f32 %v244
    %vm251 = vweird.f32 %v245
    %vm252 = vmor %vm250, %vm251
    %v253 = vsel %vm252, %v245, %v249
    %v254 = vand.u32 2147483647, %v244
    %vm255 = vcmp.eq.f32.partialorder %v254, 8.507059e+37
    %v256 = vand.u32 %v244, 2147483648
    %v257 = vor.u32 1.1754944e-38, %v256
    %v258 = vsel %vm255, %v257, %v253
    %v259 = vmul.f32 1.0, %v258
    %v260 = vtanh.pop %v240
    %v261 = vxor.u32 %v240, 2147483648
    %v262 = vmul.f32 %v261, 1.442695
    %v263 = vpow.pop %v262
    %v264 = vadd.f32 %v263, 1.0
    %v265 = vrcp.pop %v264
    %v266 = vmul.f32 %v264, %v265
    %v267 = vsub.f32 1.0, %v266
    %v268 = vmul.f32 %v265, %v267
    %v269 = vadd.f32 %v265, %v268
    %vm270 = vweird.f32 %v264
    %vm271 = vweird.f32 %v265
    %vm272 = vmor %vm270, %vm271
    %v273 = vsel %vm272, %v265, %v269
    %v274 = vand.u32 2147483647, %v264
    %vm275 = vcmp.eq.f32.partialorder %v274, 8.507059e+37
    %v276 = vand.u32 %v264, 2147483648
    %v277 = vor.u32 1.1754944e-38, %v276
    %v278 = vsel %vm275, %v277, %v273
    %v279 = vmul.f32 1.0, %v278
    %v280 = vmul.f32 %v259, 0.0
    %v281 = vmul.f32 %v259, %v260
    %283 = vrot.lane.b32.xlu0 %v281, 64
    %v284 = vpop.permute.xlu0 %283
    %v286 = vadd.f32 %v280, %v284
    %v287 = vtanh.pop %v286
    %v288 = vmul.f32 %v279, %v287
    %v289 = vld [vmem:[#allocation2] sm:$0xc]
    %v290 = vld [vmem:[#allocation2 + $0x8] sm:$0xc]
    %v291 = vld [vmem:[#allocation2 + $0x10] sm:$0x30]
    %v292 = vld [vmem:[#allocation2 + $0x18] sm:$0x30]
    %v295 = vrot.slane %v291, 2
    %v296 = vrot.slane %v292, 2
    %v299 = vsel %vm185, %v289, %v295
    %v300 = vsel %vm186, %v290, %v296
    %302 = vrot.lane.b32.xlu0 %v288, 64
    %v303 = vpop.permute.xlu0 %302
    %v304 = vsel %vm195, %v303, 0
    %306 = vmatpush.msra.mxu0 0.0
    %307 = vmatpush.msra.mxu0 0.0
    %308 = vmatpush.msra.mxu0 0.0
    %309 = vmatpush.msra.mxu0 0.0
    %310 = vmatpush.msra.mxu0 0.0
    %311 = vmatpush.msra.mxu0 0.0
    %312 = vmatpush.msra.mxu0 0.0
    %313 = vmatpush.msra.mxu0 0.0
    %314 = vmatpush.msra.mxu0 %v148
    %315 = vmatpush.msra.mxu0 %v146
    %316 = vmatpush.msra.mxu0 %v144
    %317 = vmatpush.msra.mxu0 %v142
    %318 = vmatpush.msra.mxu0 %v140
    %319 = vmatpush.msra.mxu0 %v138
    %320 = vmatpush.msra.mxu0 %v136
    %321 = vmatpush.msra.mxu0 %v134
    %322 = vmatmul.f32.gmra.mxu0 %v304
    %v323 = vpop.f32.mrf.mxu0
    %v324 = vadd.f32 0.0, %v323
    %325 = vdwg.mxu0
    %326 = vmatpush.msra.mxu0 0.0
    %327 = vmatpush.msra.mxu0 0.0
    %328 = vmatpush.msra.mxu0 0.0
    %329 = vmatpush.msra.mxu0 0.0
    %330 = vmatpush.msra.mxu0 0.0
    %331 = vmatpush.msra.mxu0 0.0
    %332 = vmatpush.msra.mxu0 0.0
    %333 = vmatpush.msra.mxu0 0.0
    %334 = vmatpush.msra.mxu0 %v149
    %335 = vmatpush.msra.mxu0 %v147
    %336 = vmatpush.msra.mxu0 %v145
    %337 = vmatpush.msra.mxu0 %v143
    %338 = vmatpush.msra.mxu0 %v141
    %339 = vmatpush.msra.mxu0 %v139
    %340 = vmatpush.msra.mxu0 %v137
    %341 = vmatpush.msra.mxu0 %v135
    %342 = vmatmul.f32.gmra.mxu0 %v304
    %v343 = vpop.f32.mrf.mxu0
    %v344 = vadd.f32 0.0, %v343
    %345 = vdwg.mxu0
    %v348 = vrot.slane %v324, 6
    %v349 = vrot.slane %v344, 6
    %v352 = vadd.f32 %v299, %v348
    %v353 = vadd.f32 %v300, %v349
    %v354 = vxor.u32 %v352, 2147483648
    %v355 = vmul.f32 %v354, 1.442695
    %v356 = vpow.pop %v355
    %v357 = vadd.f32 %v356, 1.0
    %v358 = vrcp.pop %v357
    %v359 = vmul.f32 %v357, %v358
    %v360 = vsub.f32 1.0, %v359
    %v361 = vmul.f32 %v358, %v360
    %v362 = vadd.f32 %v358, %v361
    %vm363 = vweird.f32 %v357
    %vm364 = vweird.f32 %v358
    %vm365 = vmor %vm363, %vm364
    %v366 = vsel %vm365, %v358, %v362
    %v367 = vand.u32 2147483647, %v357
    %vm368 = vcmp.eq.f32.partialorder %v367, 8.507059e+37
    %v369 = vand.u32 %v357, 2147483648
    %v370 = vor.u32 1.1754944e-38, %v369
    %v371 = vsel %vm368, %v370, %v366
    %v372 = vmul.f32 1.0, %v371
    %v373 = vtanh.pop %v353
    %v374 = vxor.u32 %v353, 2147483648
    %v375 = vmul.f32 %v374, 1.442695
    %v376 = vpow.pop %v375
    %v377 = vadd.f32 %v376, 1.0
    %v378 = vrcp.pop %v377
    %v379 = vmul.f32 %v377, %v378
    %v380 = vsub.f32 1.0, %v379
    %v381 = vmul.f32 %v378, %v380
    %v382 = vadd.f32 %v378, %v381
    %vm383 = vweird.f32 %v377
    %vm384 = vweird.f32 %v378
    %vm385 = vmor %vm383, %vm384
    %v386 = vsel %vm385, %v378, %v382
    %v387 = vand.u32 2147483647, %v377
    %vm388 = vcmp.eq.f32.partialorder %v387, 8.507059e+37
    %v389 = vand.u32 %v377, 2147483648
    %v390 = vor.u32 1.1754944e-38, %v389
    %v391 = vsel %vm388, %v390, %v386
    %v392 = vmul.f32 1.0, %v391
    %v394 = vrot.slane %v286, 6
    %v396 = vmul.f32 %v372, %v394
    %v397 = vmul.f32 %v372, %v373
    %399 = vrot.lane.b32.xlu0 %v397, 64
    %v400 = vpop.permute.xlu0 %399
    %v402 = vadd.f32 %v396, %v400
    %v403 = vtanh.pop %v402
    %v404 = vmul.f32 %v392, %v403
    %v405 = vld [vmem:[#allocation2] sm:$0x30]
    %v406 = vld [vmem:[#allocation2 + $0x8] sm:$0x30]
    %v407 = vld [vmem:[#allocation2 + $0x10] sm:$0xc]
    %v408 = vld [vmem:[#allocation2 + $0x18] sm:$0xc]
    %v411 = vrot.slane %v407, 6
    %v412 = vrot.slane %v408, 6
    %v415 = vsel %vm185, %v405, %v411
    %v416 = vsel %vm186, %v406, %v412
    %v418 = vrot.slane %v404, 2
    %419 = vrot.lane.b32.xlu0 %v418, 64
    %v420 = vpop.permute.xlu0 %419
    %v421 = vsel %vm195, %v420, 0
    %423 = vmatpush.msra.mxu0 0.0
    %424 = vmatpush.msra.mxu0 0.0
    %425 = vmatpush.msra.mxu0 0.0
    %426 = vmatpush.msra.mxu0 0.0
    %427 = vmatpush.msra.mxu0 0.0
    %428 = vmatpush.msra.mxu0 0.0
    %429 = vmatpush.msra.mxu0 0.0
    %430 = vmatpush.msra.mxu0 0.0
    %431 = vmatpush.msra.mxu0 %v148
    %432 = vmatpush.msra.mxu0 %v146
    %433 = vmatpush.msra.mxu0 %v144
    %434 = vmatpush.msra.mxu0 %v142
    %435 = vmatpush.msra.mxu0 %v140
    %436 = vmatpush.msra.mxu0 %v138
    %437 = vmatpush.msra.mxu0 %v136
    %438 = vmatpush.msra.mxu0 %v134
    %439 = vmatmul.f32.gmra.mxu0 %v421
    %v440 = vpop.f32.mrf.mxu0
    %v441 = vadd.f32 0.0, %v440
    %442 = vdwg.mxu0
    %443 = vmatpush.msra.mxu0 0.0
    %444 = vmatpush.msra.mxu0 0.0
    %445 = vmatpush.msra.mxu0 0.0
    %446 = vmatpush.msra.mxu0 0.0
    %447 = vmatpush.msra.mxu0 0.0
    %448 = vmatpush.msra.mxu0 0.0
    %449 = vmatpush.msra.mxu0 0.0
    %450 = vmatpush.msra.mxu0 0.0
    %451 = vmatpush.msra.mxu0 %v149
    %452 = vmatpush.msra.mxu0 %v147
    %453 = vmatpush.msra.mxu0 %v145
    %454 = vmatpush.msra.mxu0 %v143
    %455 = vmatpush.msra.mxu0 %v141
    %456 = vmatpush.msra.mxu0 %v139
    %457 = vmatpush.msra.mxu0 %v137
    %458 = vmatpush.msra.mxu0 %v135
    %459 = vmatmul.f32.gmra.mxu0 %v421
    %v460 = vpop.f32.mrf.mxu0
    %v461 = vadd.f32 0.0, %v460
    %462 = vdwg.mxu0
    %v465 = vrot.slane %v441, 4
    %v466 = vrot.slane %v461, 4
    %v469 = vadd.f32 %v415, %v465
    %v470 = vadd.f32 %v416, %v466
    %v471 = vxor.u32 %v469, 2147483648
    %v472 = vmul.f32 %v471, 1.442695
    %v473 = vpow.pop %v472
    %v474 = vadd.f32 %v473, 1.0
    %v475 = vrcp.pop %v474
    %v476 = vmul.f32 %v474, %v475
    %v477 = vsub.f32 1.0, %v476
    %v478 = vmul.f32 %v475, %v477
    %v479 = vadd.f32 %v475, %v478
    %vm480 = vweird.f32 %v474
    %vm481 = vweird.f32 %v475
    %vm482 = vmor %vm480, %vm481
    %v483 = vsel %vm482, %v475, %v479
    %v484 = vand.u32 2147483647, %v474
    %vm485 = vcmp.eq.f32.partialorder %v484, 8.507059e+37
    %v486 = vand.u32 %v474, 2147483648
    %v487 = vor.u32 1.1754944e-38, %v486
    %v488 = vsel %vm485, %v487, %v483
    %v489 = vmul.f32 1.0, %v488
    %v490 = vtanh.pop %v470
    %v491 = vxor.u32 %v470, 2147483648
    %v492 = vmul.f32 %v491, 1.442695
    %v493 = vpow.pop %v492
    %v494 = vadd.f32 %v493, 1.0
    %v495 = vrcp.pop %v494
    %v496 = vmul.f32 %v494, %v495
    %v497 = vsub.f32 1.0, %v496
    %v498 = vmul.f32 %v495, %v497
    %v499 = vadd.f32 %v495, %v498
    %vm500 = vweird.f32 %v494
    %vm501 = vweird.f32 %v495
    %vm502 = vmor %vm500, %vm501
    %v503 = vsel %vm502, %v495, %v499
    %v504 = vand.u32 2147483647, %v494
    %vm505 = vcmp.eq.f32.partialorder %v504, 8.507059e+37
    %v506 = vand.u32 %v494, 2147483648
    %v507 = vor.u32 1.1754944e-38, %v506
    %v508 = vsel %vm505, %v507, %v503
    %v509 = vmul.f32 1.0, %v508
    %v511 = vrot.slane %v402, 6
    %v513 = vmul.f32 %v489, %v511
    %v514 = vmul.f32 %v489, %v490
    %516 = vrot.lane.b32.xlu0 %v514, 64
    %v517 = vpop.permute.xlu0 %516
    %v519 = vadd.f32 %v513, %v517
    %v520 = vtanh.pop %v519
    %v521 = vmul.f32 %v509, %v520
    %v522 = vld [vmem:[#allocation2] sm:$0xc0]
    %v523 = vld [vmem:[#allocation2 + $0x8] sm:$0xc0]
    %v524 = vld [vmem:[#allocation2 + $0x10] sm:$0x3]
    %v525 = vld [vmem:[#allocation2 + $0x18] sm:$0x3]
    %v528 = vrot.slane %v524, 2
    %v529 = vrot.slane %v525, 2
    %v532 = vsel %vm185, %v522, %v528
    %v533 = vsel %vm186, %v523, %v529
    %v535 = vrot.slane %v521, 4
    %536 = vrot.lane.b32.xlu0 %v535, 64
    %v537 = vpop.permute.xlu0 %536
    %v538 = vsel %vm195, %v537, 0
    %540 = vmatpush.msra.mxu0 0.0
    %541 = vmatpush.msra.mxu0 0.0
    %542 = vmatpush.msra.mxu0 0.0
    %543 = vmatpush.msra.mxu0 0.0
    %544 = vmatpush.msra.mxu0 0.0
    %545 = vmatpush.msra.mxu0 0.0
    %546 = vmatpush.msra.mxu0 0.0
    %547 = vmatpush.msra.mxu0 0.0
    %548 = vmatpush.msra.mxu0 %v148
    %549 = vmatpush.msra.mxu0 %v146
    %550 = vmatpush.msra.mxu0 %v144
    %551 = vmatpush.msra.mxu0 %v142
    %552 = vmatpush.msra.mxu0 %v140
    %553 = vmatpush.msra.mxu0 %v138
    %554 = vmatpush.msra.mxu0 %v136
    %555 = vmatpush.msra.mxu0 %v134
    %556 = vmatmul.f32.gmra.mxu0 %v538
    %v557 = vpop.f32.mrf.mxu0
    %v558 = vadd.f32 0.0, %v557
    %559 = vdwg.mxu0
    %560 = vmatpush.msra.mxu0 0.0
    %561 = vmatpush.msra.mxu0 0.0
    %562 = vmatpush.msra.mxu0 0.0
    %563 = vmatpush.msra.mxu0 0.0
    %564 = vmatpush.msra.mxu0 0.0
    %565 = vmatpush.msra.mxu0 0.0
    %566 = vmatpush.msra.mxu0 0.0
    %567 = vmatpush.msra.mxu0 0.0
    %568 = vmatpush.msra.mxu0 %v149
    %569 = vmatpush.msra.mxu0 %v147
    %570 = vmatpush.msra.mxu0 %v145
    %571 = vmatpush.msra.mxu0 %v143
    %572 = vmatpush.msra.mxu0 %v141
    %573 = vmatpush.msra.mxu0 %v139
    %574 = vmatpush.msra.mxu0 %v137
    %575 = vmatpush.msra.mxu0 %v135
    %576 = vmatmul.f32.gmra.mxu0 %v538
    %v577 = vpop.f32.mrf.mxu0
    %v578 = vadd.f32 0.0, %v577
    %579 = vdwg.mxu0
    %v582 = vrot.slane %v558, 2
    %v583 = vrot.slane %v578, 2
    %v586 = vadd.f32 %v532, %v582
    %v587 = vadd.f32 %v533, %v583
    %v588 = vxor.u32 %v586, 2147483648
    %v589 = vmul.f32 %v588, 1.442695
    %v590 = vpow.pop %v589
    %v591 = vadd.f32 %v590, 1.0
    %v592 = vrcp.pop %v591
    %v593 = vmul.f32 %v591, %v592
    %v594 = vsub.f32 1.0, %v593
    %v595 = vmul.f32 %v592, %v594
    %v596 = vadd.f32 %v592, %v595
    %vm597 = vweird.f32 %v591
    %vm598 = vweird.f32 %v592
    %vm599 = vmor %vm597, %vm598
    %v600 = vsel %vm599, %v592, %v596
    %v601 = vand.u32 2147483647, %v591
    %vm602 = vcmp.eq.f32.partialorder %v601, 8.507059e+37
    %v603 = vand.u32 %v591, 2147483648
    %v604 = vor.u32 1.1754944e-38, %v603
    %v605 = vsel %vm602, %v604, %v600
    %v606 = vmul.f32 1.0, %v605
    %v607 = vtanh.pop %v587
    %v608 = vxor.u32 %v587, 2147483648
    %v609 = vmul.f32 %v608, 1.442695
    %v610 = vpow.pop %v609
    %v611 = vadd.f32 %v610, 1.0
    %v612 = vrcp.pop %v611
    %v613 = vmul.f32 %v611, %v612
    %v614 = vsub.f32 1.0, %v613
    %v615 = vmul.f32 %v612, %v614
    %v616 = vadd.f32 %v612, %v615
    %vm617 = vweird.f32 %v611
    %vm618 = vweird.f32 %v612
    %vm619 = vmor %vm617, %vm618
    %v620 = vsel %vm619, %v612, %v616
    %v621 = vand.u32 2147483647, %v611
    %vm622 = vcmp.eq.f32.partialorder %v621, 8.507059e+37
    %v623 = vand.u32 %v611, 2147483648
    %v624 = vor.u32 1.1754944e-38, %v623
    %v625 = vsel %vm622, %v624, %v620
    %v626 = vmul.f32 1.0, %v625
    %v628 = vrot.slane %v519, 6
    %v630 = vmul.f32 %v606, %v628
    %v631 = vmul.f32 %v606, %v607
    %633 = vrot.lane.b32.xlu0 %v631, 64
    %v634 = vpop.permute.xlu0 %633
    %v636 = vadd.f32 %v630, %v634
    %v637 = vtanh.pop %v636
    %v638 = vmul.f32 %v626, %v637
    %v641 = vrot.slane %v522, 6
    %v642 = vrot.slane %v523, 6
    %v645 = vsel %vm185, %v524, %v641
    %v646 = vsel %vm186, %v525, %v642
    %v648 = vrot.slane %v638, 6
    %649 = vrot.lane.b32.xlu0 %v648, 64
    %v650 = vpop.permute.xlu0 %649
    %v651 = vsel %vm195, %v650, 0
    %653 = vmatpush.msra.mxu0 0.0
    %654 = vmatpush.msra.mxu0 0.0
    %655 = vmatpush.msra.mxu0 0.0
    %656 = vmatpush.msra.mxu0 0.0
    %657 = vmatpush.msra.mxu0 0.0
    %658 = vmatpush.msra.mxu0 0.0
    %659 = vmatpush.msra.mxu0 0.0
    %660 = vmatpush.msra.mxu0 0.0
    %661 = vmatpush.msra.mxu0 %v148
    %662 = vmatpush.msra.mxu0 %v146
    %663 = vmatpush.msra.mxu0 %v144
    %664 = vmatpush.msra.mxu0 %v142
    %665 = vmatpush.msra.mxu0 %v140
    %666 = vmatpush.msra.mxu0 %v138
    %667 = vmatpush.msra.mxu0 %v136
    %668 = vmatpush.msra.mxu0 %v134
    %669 = vmatmul.f32.gmra.mxu0 %v651
    %v670 = vpop.f32.mrf.mxu0
    %v671 = vadd.f32 0.0, %v670
    %672 = vdwg.mxu0
    %673 = vmatpush.msra.mxu0 0.0
    %674 = vmatpush.msra.mxu0 0.0
    %675 = vmatpush.msra.mxu0 0.0
    %676 = vmatpush.msra.mxu0 0.0
    %677 = vmatpush.msra.mxu0 0.0
    %678 = vmatpush.msra.mxu0 0.0
    %679 = vmatpush.msra.mxu0 0.0
    %680 = vmatpush.msra.mxu0 0.0
    %681 = vmatpush.msra.mxu0 %v149
    %682 = vmatpush.msra.mxu0 %v147
    %683 = vmatpush.msra.mxu0 %v145
    %684 = vmatpush.msra.mxu0 %v143
    %685 = vmatpush.msra.mxu0 %v141
    %686 = vmatpush.msra.mxu0 %v139
    %687 = vmatpush.msra.mxu0 %v137
    %688 = vmatpush.msra.mxu0 %v135
    %689 = vmatmul.f32.gmra.mxu0 %v651
    %v690 = vpop.f32.mrf.mxu0
    %v691 = vadd.f32 0.0, %v690
    %692 = vdwg.mxu0
    %v693 = vadd.f32 %v645, %v671
    %v694 = vadd.f32 %v646, %v691
    %v695 = vxor.u32 %v693, 2147483648
    %v696 = vmul.f32 %v695, 1.442695
    %v697 = vpow.pop %v696
    %v698 = vadd.f32 %v697, 1.0
    %v699 = vrcp.pop %v698
    %v700 = vmul.f32 %v698, %v699
    %v701 = vsub.f32 1.0, %v700
    %v702 = vmul.f32 %v699, %v701
    %v703 = vadd.f32 %v699, %v702
    %vm704 = vweird.f32 %v698
    %vm705 = vweird.f32 %v699
    %vm706 = vmor %vm704, %vm705
    %v707 = vsel %vm706, %v699, %v703
    %v708 = vand.u32 2147483647, %v698
    %vm709 = vcmp.eq.f32.partialorder %v708, 8.507059e+37
    %v710 = vand.u32 %v698, 2147483648
    %v711 = vor.u32 1.1754944e-38, %v710
    %v712 = vsel %vm709, %v711, %v707
    %v713 = vmul.f32 1.0, %v712
    %v714 = vtanh.pop %v694
    %v715 = vxor.u32 %v694, 2147483648
    %v716 = vmul.f32 %v715, 1.442695
    %v717 = vpow.pop %v716
    %v718 = vadd.f32 %v717, 1.0
    %v719 = vrcp.pop %v718
    %v720 = vmul.f32 %v718, %v719
    %v721 = vsub.f32 1.0, %v720
    %v722 = vmul.f32 %v719, %v721
    %v723 = vadd.f32 %v719, %v722
    %vm724 = vweird.f32 %v718
    %vm725 = vweird.f32 %v719
    %vm726 = vmor %vm724, %vm725
    %v727 = vsel %vm726, %v719, %v723
    %v728 = vand.u32 2147483647, %v718
    %vm729 = vcmp.eq.f32.partialorder %v728, 8.507059e+37
    %v730 = vand.u32 %v718, 2147483648
    %v731 = vor.u32 1.1754944e-38, %v730
    %v732 = vsel %vm729, %v731, %v727
    %v733 = vmul.f32 1.0, %v732
    %v735 = vrot.slane %v636, 6
    %v737 = vmul.f32 %v713, %v735
    %v738 = vmul.f32 %v713, %v714
    %740 = vrot.lane.b32.xlu0 %v738, 64
    %v741 = vpop.permute.xlu0 %740
    %v743 = vadd.f32 %v737, %v741
    %v744 = vtanh.pop %v743
    %v745 = vmul.f32 %v733, %v744
    %v748 = vrot.slane %v405, 2
    %v749 = vrot.slane %v406, 2
    %v752 = vsel %vm185, %v407, %v748
    %v753 = vsel %vm186, %v408, %v749
    %755 = vrot.lane.b32.xlu0 %v745, 64
    %v756 = vpop.permute.xlu0 %755
    %v757 = vsel %vm195, %v756, 0
    %759 = vmatpush.msra.mxu0 0.0
    %760 = vmatpush.msra.mxu0 0.0
    %761 = vmatpush.msra.mxu0 0.0
    %762 = vmatpush.msra.mxu0 0.0
    %763 = vmatpush.msra.mxu0 0.0
    %764 = vmatpush.msra.mxu0 0.0
    %765 = vmatpush.msra.mxu0 0.0
    %766 = vmatpush.msra.mxu0 0.0
    %767 = vmatpush.msra.mxu0 %v148
    %768 = vmatpush.msra.mxu0 %v146
    %769 = vmatpush.msra.mxu0 %v144
    %770 = vmatpush.msra.mxu0 %v142
    %771 = vmatpush.msra.mxu0 %v140
    %772 = vmatpush.msra.mxu0 %v138
    %773 = vmatpush.msra.mxu0 %v136
    %774 = vmatpush.msra.mxu0 %v134
    %775 = vmatmul.f32.gmra.mxu0 %v757
    %v776 = vpop.f32.mrf.mxu0
    %v777 = vadd.f32 0.0, %v776
    %778 = vdwg.mxu0
    %779 = vmatpush.msra.mxu0 0.0
    %780 = vmatpush.msra.mxu0 0.0
    %781 = vmatpush.msra.mxu0 0.0
    %782 = vmatpush.msra.mxu0 0.0
    %783 = vmatpush.msra.mxu0 0.0
    %784 = vmatpush.msra.mxu0 0.0
    %785 = vmatpush.msra.mxu0 0.0
    %786 = vmatpush.msra.mxu0 0.0
    %787 = vmatpush.msra.mxu0 %v149
    %788 = vmatpush.msra.mxu0 %v147
    %789 = vmatpush.msra.mxu0 %v145
    %790 = vmatpush.msra.mxu0 %v143
    %791 = vmatpush.msra.mxu0 %v141
    %792 = vmatpush.msra.mxu0 %v139
    %793 = vmatpush.msra.mxu0 %v137
    %794 = vmatpush.msra.mxu0 %v135
    %795 = vmatmul.f32.gmra.mxu0 %v757
    %v796 = vpop.f32.mrf.mxu0
    %v797 = vadd.f32 0.0, %v796
    %798 = vdwg.mxu0
    %v801 = vrot.slane %v777, 6
    %v802 = vrot.slane %v797, 6
    %v805 = vadd.f32 %v752, %v801
    %v806 = vadd.f32 %v753, %v802
    %v807 = vxor.u32 %v805, 2147483648
    %v808 = vmul.f32 %v807, 1.442695
    %v809 = vpow.pop %v808
    %v810 = vadd.f32 %v809, 1.0
    %v811 = vrcp.pop %v810
    %v812 = vmul.f32 %v810, %v811
    %v813 = vsub.f32 1.0, %v812
    %v814 = vmul.f32 %v811, %v813
    %v815 = vadd.f32 %v811, %v814
    %vm816 = vweird.f32 %v810
    %vm817 = vweird.f32 %v811
    %vm818 = vmor %vm816, %vm817
    %v819 = vsel %vm818, %v811, %v815
    %v820 = vand.u32 2147483647, %v810
    %vm821 = vcmp.eq.f32.partialorder %v820, 8.507059e+37
    %v822 = vand.u32 %v810, 2147483648
    %v823 = vor.u32 1.1754944e-38, %v822
    %v824 = vsel %vm821, %v823, %v819
    %v825 = vmul.f32 1.0, %v824
    %v826 = vtanh.pop %v806
    %v827 = vxor.u32 %v806, 2147483648
    %v828 = vmul.f32 %v827, 1.442695
    %v829 = vpow.pop %v828
    %v830 = vadd.f32 %v829, 1.0
    %v831 = vrcp.pop %v830
    %v832 = vmul.f32 %v830, %v831
    %v833 = vsub.f32 1.0, %v832
    %v834 = vmul.f32 %v831, %v833
    %v835 = vadd.f32 %v831, %v834
    %vm836 = vweird.f32 %v830
    %vm837 = vweird.f32 %v831
    %vm838 = vmor %vm836, %vm837
    %v839 = vsel %vm838, %v831, %v835
    %v840 = vand.u32 2147483647, %v830
    %vm841 = vcmp.eq.f32.partialorder %v840, 8.507059e+37
    %v842 = vand.u32 %v830, 2147483648
    %v843 = vor.u32 1.1754944e-38, %v842
    %v844 = vsel %vm841, %v843, %v839
    %v845 = vmul.f32 1.0, %v844
    %v847 = vrot.slane %v743, 6
    %v849 = vmul.f32 %v825, %v847
    %v850 = vmul.f32 %v825, %v826
    %852 = vrot.lane.b32.xlu0 %v850, 64
    %v853 = vpop.permute.xlu0 %852
    %v855 = vadd.f32 %v849, %v853
    %v856 = vtanh.pop %v855
    %v857 = vmul.f32 %v845, %v856
    %v860 = vrot.slane %v289, 6
    %v861 = vrot.slane %v290, 6
    %v864 = vsel %vm185, %v291, %v860
    %v865 = vsel %vm186, %v292, %v861
    %v867 = vrot.slane %v857, 2
    %868 = vrot.lane.b32.xlu0 %v867, 64
    %v869 = vpop.permute.xlu0 %868
    %v870 = vsel %vm195, %v869, 0
    %872 = vmatpush.msra.mxu0 0.0
    %873 = vmatpush.msra.mxu0 0.0
    %874 = vmatpush.msra.mxu0 0.0
    %875 = vmatpush.msra.mxu0 0.0
    %876 = vmatpush.msra.mxu0 0.0
    %877 = vmatpush.msra.mxu0 0.0
    %878 = vmatpush.msra.mxu0 0.0
    %879 = vmatpush.msra.mxu0 0.0
    %880 = vmatpush.msra.mxu0 %v148
    %881 = vmatpush.msra.mxu0 %v146
    %882 = vmatpush.msra.mxu0 %v144
    %883 = vmatpush.msra.mxu0 %v142
    %884 = vmatpush.msra.mxu0 %v140
    %885 = vmatpush.msra.mxu0 %v138
    %886 = vmatpush.msra.mxu0 %v136
    %887 = vmatpush.msra.mxu0 %v134
    %888 = vmatmul.f32.gmra.mxu0 %v870
    %v889 = vpop.f32.mrf.mxu0
    %v890 = vadd.f32 0.0, %v889
    %891 = vdwg.mxu0
    %892 = vmatpush.msra.mxu0 0.0
    %893 = vmatpush.msra.mxu0 0.0
    %894 = vmatpush.msra.mxu0 0.0
    %895 = vmatpush.msra.mxu0 0.0
    %896 = vmatpush.msra.mxu0 0.0
    %897 = vmatpush.msra.mxu0 0.0
    %898 = vmatpush.msra.mxu0 0.0
    %899 = vmatpush.msra.mxu0 0.0
    %900 = vmatpush.msra.mxu0 %v149
    %901 = vmatpush.msra.mxu0 %v147
    %902 = vmatpush.msra.mxu0 %v145
    %903 = vmatpush.msra.mxu0 %v143
    %904 = vmatpush.msra.mxu0 %v141
    %905 = vmatpush.msra.mxu0 %v139
    %906 = vmatpush.msra.mxu0 %v137
    %907 = vmatpush.msra.mxu0 %v135
    %908 = vmatmul.f32.gmra.mxu0 %v870
    %v909 = vpop.f32.mrf.mxu0
    %v910 = vadd.f32 0.0, %v909
    %911 = vdwg.mxu0
    %v914 = vrot.slane %v890, 4
    %v915 = vrot.slane %v910, 4
    %v918 = vadd.f32 %v864, %v914
    %v919 = vadd.f32 %v865, %v915
    %v920 = vxor.u32 %v918, 2147483648
    %v921 = vmul.f32 %v920, 1.442695
    %v922 = vpow.pop %v921
    %v923 = vadd.f32 %v922, 1.0
    %v924 = vrcp.pop %v923
    %v925 = vmul.f32 %v923, %v924
    %v926 = vsub.f32 1.0, %v925
    %v927 = vmul.f32 %v924, %v926
    %v928 = vadd.f32 %v924, %v927
    %vm929 = vweird.f32 %v923
    %vm930 = vweird.f32 %v924
    %vm931 = vmor %vm929, %vm930
    %v932 = vsel %vm931, %v924, %v928
    %v933 = vand.u32 2147483647, %v923
    %vm934 = vcmp.eq.f32.partialorder %v933, 8.507059e+37
    %v935 = vand.u32 %v923, 2147483648
    %v936 = vor.u32 1.1754944e-38, %v935
    %v937 = vsel %vm934, %v936, %v932
    %v938 = vmul.f32 1.0, %v937
    %v939 = vtanh.pop %v919
    %v940 = vxor.u32 %v919, 2147483648
    %v941 = vmul.f32 %v940, 1.442695
    %v942 = vpow.pop %v941
    %v943 = vadd.f32 %v942, 1.0
    %v944 = vrcp.pop %v943
    %v945 = vmul.f32 %v943, %v944
    %v946 = vsub.f32 1.0, %v945
    %v947 = vmul.f32 %v944, %v946
    %v948 = vadd.f32 %v944, %v947
    %vm949 = vweird.f32 %v943
    %vm950 = vweird.f32 %v944
    %vm951 = vmor %vm949, %vm950
    %v952 = vsel %vm951, %v944, %v948
    %v953 = vand.u32 2147483647, %v943
    %vm954 = vcmp.eq.f32.partialorder %v953, 8.507059e+37
    %v955 = vand.u32 %v943, 2147483648
    %v956 = vor.u32 1.1754944e-38, %v955
    %v957 = vsel %vm954, %v956, %v952
    %v958 = vmul.f32 1.0, %v957
    %v960 = vrot.slane %v855, 6
    %v962 = vmul.f32 %v938, %v960
    %v963 = vmul.f32 %v938, %v939
    %965 = vrot.lane.b32.xlu0 %v963, 64
    %v966 = vpop.permute.xlu0 %965
    %v968 = vadd.f32 %v962, %v966
    %v969 = vtanh.pop %v968
    %v970 = vmul.f32 %v958, %v969
    %v973 = vrot.slane %v179, 2
    %v974 = vrot.slane %v180, 2
    %v977 = vsel %vm185, %v181, %v973
    %v978 = vsel %vm186, %v182, %v974
    %v980 = vrot.slane %v970, 4
    %981 = vrot.lane.b32.xlu0 %v980, 64
    %v982 = vpop.permute.xlu0 %981
    %v983 = vsel %vm195, %v982, 0
    %985 = vmatpush.msra.mxu0 0.0
    %986 = vmatpush.msra.mxu0 0.0
    %987 = vmatpush.msra.mxu0 0.0
    %988 = vmatpush.msra.mxu0 0.0
    %989 = vmatpush.msra.mxu0 0.0
    %990 = vmatpush.msra.mxu0 0.0
    %991 = vmatpush.msra.mxu0 0.0
    %992 = vmatpush.msra.mxu0 0.0
    %993 = vmatpush.msra.mxu0 %v148
    %994 = vmatpush.msra.mxu0 %v146
    %995 = vmatpush.msra.mxu0 %v144
    %996 = vmatpush.msra.mxu0 %v142
    %997 = vmatpush.msra.mxu0 %v140
    %998 = vmatpush.msra.mxu0 %v138
    %999 = vmatpush.msra.mxu0 %v136
    %1000 = vmatpush.msra.mxu0 %v134
    %1001 = vmatmul.f32.gmra.mxu0 %v983
    %v1002 = vpop.f32.mrf.mxu0
    %v1003 = vadd.f32 0.0, %v1002
    %1004 = vdwg.mxu0
    %1005 = vmatpush.msra.mxu0 0.0
    %1006 = vmatpush.msra.mxu0 0.0
    %1007 = vmatpush.msra.mxu0 0.0
    %1008 = vmatpush.msra.mxu0 0.0
    %1009 = vmatpush.msra.mxu0 0.0
    %1010 = vmatpush.msra.mxu0 0.0
    %1011 = vmatpush.msra.mxu0 0.0
    %1012 = vmatpush.msra.mxu0 0.0
    %1013 = vmatpush.msra.mxu0 %v149
    %1014 = vmatpush.msra.mxu0 %v147
    %1015 = vmatpush.msra.mxu0 %v145
    %1016 = vmatpush.msra.mxu0 %v143
    %1017 = vmatpush.msra.mxu0 %v141
    %1018 = vmatpush.msra.mxu0 %v139
    %1019 = vmatpush.msra.mxu0 %v137
    %1020 = vmatpush.msra.mxu0 %v135
    %1021 = vmatmul.f32.gmra.mxu0 %v983
    %v1022 = vpop.f32.mrf.mxu0
    %v1023 = vadd.f32 0.0, %v1022
    %1024 = vdwg.mxu0
    %v1027 = vrot.slane %v1003, 2
    %v1028 = vrot.slane %v1023, 2
    %v1031 = vadd.f32 %v977, %v1027
    %v1032 = vadd.f32 %v978, %v1028
    %v1033 = vxor.u32 %v1031, 2147483648
    %v1034 = vmul.f32 %v1033, 1.442695
    %v1035 = vpow.pop %v1034
    %v1036 = vadd.f32 %v1035, 1.0
    %v1037 = vrcp.pop %v1036
    %v1038 = vmul.f32 %v1036, %v1037
    %v1039 = vsub.f32 1.0, %v1038
    %v1040 = vmul.f32 %v1037, %v1039
    %v1041 = vadd.f32 %v1037, %v1040
    %vm1042 = vweird.f32 %v1036
    %vm1043 = vweird.f32 %v1037
    %vm1044 = vmor %vm1042, %vm1043
    %v1045 = vsel %vm1044, %v1037, %v1041
    %v1046 = vand.u32 2147483647, %v1036
    %vm1047 = vcmp.eq.f32.partialorder %v1046, 8.507059e+37
    %v1048 = vand.u32 %v1036, 2147483648
    %v1049 = vor.u32 1.1754944e-38, %v1048
    %v1050 = vsel %vm1047, %v1049, %v1045
    %v1051 = vmul.f32 1.0, %v1050
    %v1052 = vtanh.pop %v1032
    %v1053 = vxor.u32 %v1032, 2147483648
    %v1054 = vmul.f32 %v1053, 1.442695
    %v1055 = vpow.pop %v1054
    %v1056 = vadd.f32 %v1055, 1.0
    %v1057 = vrcp.pop %v1056
    %v1058 = vmul.f32 %v1056, %v1057
    %v1059 = vsub.f32 1.0, %v1058
    %v1060 = vmul.f32 %v1057, %v1059
    %v1061 = vadd.f32 %v1057, %v1060
    %vm1062 = vweird.f32 %v1056
    %vm1063 = vweird.f32 %v1057
    %vm1064 = vmor %vm1062, %vm1063
    %v1065 = vsel %vm1064, %v1057, %v1061
    %v1066 = vand.u32 2147483647, %v1056
    %vm1067 = vcmp.eq.f32.partialorder %v1066, 8.507059e+37
    %v1068 = vand.u32 %v1056, 2147483648
    %v1069 = vor.u32 1.1754944e-38, %v1068
    %v1070 = vsel %vm1067, %v1069, %v1065
    %v1071 = vmul.f32 1.0, %v1070
    %v1073 = vrot.slane %v968, 6
    %v1075 = vmul.f32 %v1051, %v1073
    %v1076 = vmul.f32 %v1051, %v1052
    %1078 = vrot.lane.b32.xlu0 %v1076, 64
    %v1079 = vpop.permute.xlu0 %1078
    %v1081 = vadd.f32 %v1075, %v1079
    %v1082 = vtanh.pop %v1081
    %v1083 = vmul.f32 %v1071, %v1082
    %1085 = vrot.lane.b32.xlu0 %v1083, 64
    %v1086 = vpop.permute.xlu0 %1085
    %vm1088 = vcmask 523270
    %1089 = vst.msk [vmem:[#allocation9 - $0x6] sm:$0xc0] %vm1088, %v1086
    // Predicated region
    $region30: #{tpu_custom_call.1} parent=1 // pred_check
      _
    $region31: #{tpu_custom_call.1} parent=1 // pred_check_branch
      %1091 = sbr.rel (0) target = $region33
    $region32: #{tpu_custom_call.1} parent=1 // pred_region
      %1093 = vsyncadd [#allocation5], 0
      %s1095 = sshll.u32 [#allocation9], 4
      %s1096 = int_to_ptr.vmem [resolvable:$true] %s1095
      %s1097 = sshll.u32 %s4, 4
      %s1098 = int_to_ptr.hbm [resolvable:$true] %s1097
      %1100 = dma.vmem_to_hbm [thread:$0]  %s1096, 32, %s1098, [#allocation5]
    $region33: #{tpu_custom_call.1} parent=1 // pred_fallthru
      _
    // Predicated region
    $region34: #{tpu_custom_call.1} parent=1 // pred_check
      _
    $region35: #{tpu_custom_call.1} parent=1 // pred_check_branch
      %1102 = sbr.rel (0) target = $region37
    $region36: #{tpu_custom_call.1} parent=1 // pred_region
      %1104 = dma.done [#allocation5], 32
    $region37: #{tpu_custom_call.1} parent=1 // pred_fallthru
      _
    %1105 = vsyncpa [#allocation4], 1
    %1106 = vsyncpa [#allocation7], 1
    %1107 = vsyncpa [#allocation5], 1

</llo_original>
